<compile_context>
chip_gen: v5e
topology: v5e:2x2
jax: 0.10.0
libtpu: 0.0.40
codegen_flags: <defaults>
</compile_context>

<pallas_src>
import math

import jax
import jax.numpy as jnp
from jax.experimental import pallas as pl
from jax.experimental.pallas import tpu as pltpu

_LANES = 128


def _cdiv(a, b):
    return (a + b - 1) // b


def _round_up(a, b):
    return _cdiv(a, b) * b


def _make_kernel(a_coef, b_scale, steps, tm):
    """Build the streaming quadratic-sum kernel.

    a_coef  = -1/sigmax^2   (python float, baked in at trace time)
    b_scale =  1/sigmax^2   (python float, baked in at trace time)
    Per element the kernel accumulates x*(a_coef*x + b) with
    b = (2*theta1 + theta2) * b_scale, i.e. the x-dependent part of
      -((x - t1)^2 + (x - t1 - t2)^2) / (2*sigmax^2).
    The theta-only constant is folded in by the wrapper with the true n.
    """
    if steps == 1:
        # Single-block regime: reduce and write directly, no scratch.
        def kernel(theta_ref, x_ref, out_ref):
            t1 = theta_ref[0]
            t2 = theta_ref[1]
            b = (2.0 * t1 + t2) * b_scale          # scalar path, once
            x = x_ref[...]
            out_ref[...] = jnp.sum(x * (a_coef * x + b), axis=0, keepdims=True)

        return kernel, []

    def kernel(theta_ref, x_ref, out_ref, acc_ref):
        i = pl.program_id(0)
        t1 = theta_ref[0]
        t2 = theta_ref[1]
        b = (2.0 * t1 + t2) * b_scale              # scalar path, once per step
        x = x_ref[...]
        contrib = x * (a_coef * x + b)             # 2 mul + 1 add per element

        @pl.when(i == 0)
        def _():
            acc_ref[...] = contrib                 # direct write, no zero-init

        @pl.when(i > 0)
        def _():
            acc_ref[...] += contrib

        @pl.when(i == steps - 1)
        def _():
            # Single sublane reduction at the very end -> tiny lane-dense out.
            out_ref[...] = jnp.sum(acc_ref[...], axis=0, keepdims=True)

    return kernel, [pltpu.VMEM((tm, _LANES), jnp.float32)]


def tied_mixture_forward(x, theta1, theta2, *, sigma1, sigma2, sigmax,
                         tm_cap=2048):
    """Returns (log prior of thetas, sum over x of log_px).  x: any-shape f32."""
    x_flat = jnp.ravel(x).astype(jnp.float32)
    n = int(x_flat.shape[0])

    # Tile sizing: choose the number of grid steps first, then the smallest
    # 8-aligned tm covering the data, so padding is bounded by alignment only.
    rows_min = max(1, _cdiv(n, _LANES))
    steps = _cdiv(rows_min, int(tm_cap))
    tm = _round_up(_cdiv(rows_min, steps), 8)
    rows = steps * tm
    pad_total = rows * _LANES - n

    if pad_total:
        # Padded zeros contribute exactly 0 in the Horner-form accumulation.
        x_flat = jnp.pad(x_flat, (0, pad_total))
    x2d = x_flat.reshape(rows, _LANES)

    theta = jnp.stack(
        [theta1.reshape(()), theta2.reshape(())]
    ).astype(jnp.float32)

    # Closed-form constants (python floats, baked in at trace time).
    c_pi = -0.5 * math.log(2.0 * math.pi)
    c1 = c_pi - math.log(sigma1)          # theta_1 prior norm const
    c2 = c_pi - math.log(sigma2)          # theta_2 prior norm const
    cx = c_pi - math.log(sigmax)          # likelihood norm const
    inv2s12 = 1.0 / (2.0 * sigma1 * sigma1)
    inv2s22 = 1.0 / (2.0 * sigma2 * sigma2)
    inv_sx2 = 1.0 / (sigmax * sigmax)
    neg2log2 = -2.0 * math.log(2.0)

    kernel, scratch = _make_kernel(-inv_sx2, inv_sx2, steps, tm)

    cost = pl.CostEstimate(
        flops=4 * rows * _LANES,
        transcendentals=0,
        bytes_accessed=4 * rows * _LANES + 4 * _LANES + 8,
    )

    partial = pl.pallas_call(
        kernel,
        out_shape=jax.ShapeDtypeStruct((1, _LANES), jnp.float32),
        grid_spec=pltpu.PrefetchScalarGridSpec(
            num_scalar_prefetch=0,
            grid=(steps,),
            in_specs=[
                pl.BlockSpec(memory_space=pltpu.SMEM),           # theta (2,)
                pl.BlockSpec((tm, _LANES), lambda i: (i, 0)),    # x tile
            ],
            # Same block index every step: written once, at the last step.
            out_specs=pl.BlockSpec((1, _LANES), lambda i: (0, 0)),
            scratch_shapes=scratch,
        ),
        compiler_params=pltpu.CompilerParams(
            dimension_semantics=("arbitrary",),
        ),
        cost_estimate=cost,
    )(theta, x2d)

    t1 = theta[0]
    t2 = theta[1]
    s = t1 + t2

    # Per-element constant (norm consts + theta-only quadratic), times true n.
    per_elem_const = (neg2log2 + 2.0 * cx) - 0.5 * (t1 * t1 + s * s) * inv_sx2
    logpx_sum = jnp.sum(partial) + n * per_elem_const

    prior = (c1 - t1 * t1 * inv2s12) + (c2 - t2 * t2 * inv2s22)
    return prior, logpx_sum


def tied_mixture_reference(x, theta1, theta2, *, sigma1, sigma2, sigmax):
    def log_gaussian(v, mu, sigma):
        return (-0.5 * math.log(2.0 * math.pi) - math.log(sigma)
                - (v - mu) ** 2 / (2.0 * sigma ** 2))

    t1 = theta1.reshape(())
    t2 = theta2.reshape(())
    prior = log_gaussian(t1, 0.0, sigma1) + log_gaussian(t2, 0.0, sigma2)
    log_px = (-2.0 * math.log(2.0)
              + log_gaussian(x, t1, sigmax)
              + log_gaussian(x, t1 + t2, sigmax))
    return prior, log_px.sum()


if __name__ == "__main__":
    # Hyperparameters of the mixture prior (python floats in the nn.Module).
    SIGMA1 = math.sqrt(10.0)
    SIGMA2 = 1.0
    SIGMAX = math.sqrt(2.0)

    key = jax.random.PRNGKey(0)
    k_t1, k_t2, k_x = jax.random.split(key, 3)

    # nn.Parameter(torch.randn(1)) analogues, deterministic.
    theta1 = jax.random.normal(k_t1, (1,), dtype=jnp.float32)
    theta2 = jax.random.normal(k_t2, (1,), dtype=jnp.float32)

    # Data: 2048 scalar samples (flat vector), as in the SGLD 1-D experiment.
    x = 2.0 * jax.random.normal(k_x, (2048,), dtype=jnp.float32) + 0.5

    prior, logpx_sum = tied_mixture_forward(
        x, theta1, theta2, sigma1=SIGMA1, sigma2=SIGMA2, sigmax=SIGMAX
    )
    jax.block_until_ready((prior, logpx_sum))

    ref_prior, ref_sum = tied_mixture_reference(
        x, theta1, theta2, sigma1=SIGMA1, sigma2=SIGMA2, sigmax=SIGMAX
    )
    assert jnp.allclose(prior, ref_prior, rtol=1e-5, atol=1e-5)
    assert jnp.allclose(logpx_sum, ref_sum, rtol=1e-4, atol=1e-2)

    # Ragged size (exercises minimal zero-padding; pads contribute exactly 0).
    x_ragged = x[:1000]
    prior_r, sum_r = tied_mixture_forward(
        x_ragged, theta1, theta2, sigma1=SIGMA1, sigma2=SIGMA2, sigmax=SIGMAX
    )
    jax.block_until_ready((prior_r, sum_r))
    ref_prior_r, ref_sum_r = tied_mixture_reference(
        x_ragged, theta1, theta2, sigma1=SIGMA1, sigma2=SIGMA2, sigmax=SIGMAX
    )
    assert jnp.allclose(prior_r, ref_prior_r, rtol=1e-5, atol=1e-5)
    assert jnp.allclose(sum_r, ref_sum_r, rtol=1e-4, atol=1e-2)

    # Multi-step path (forces steps > 1 so the scratch-accumulator branch runs).
    k_big = jax.random.split(k_x)[0]
    x_big = 2.0 * jax.random.normal(k_big, (40000,), dtype=jnp.float32) + 0.5
    prior_b, sum_b = tied_mixture_forward(
        x_big, theta1, theta2, sigma1=SIGMA1, sigma2=SIGMA2, sigmax=SIGMAX,
        tm_cap=128,
    )
    jax.block_until_ready((prior_b, sum_b))
    ref_prior_b, ref_sum_b = tied_mixture_reference(
        x_big, theta1, theta2, sigma1=SIGMA1, sigma2=SIGMA2, sigmax=SIGMAX
    )
    assert jnp.allclose(prior_b, ref_prior_b, rtol=1e-5, atol=1e-5)
    assert jnp.allclose(sum_b, ref_sum_b, rtol=1e-4, atol=1e-1)

    print("KERNEL_OK")
</pallas_src>

<mosaic_0001>
module attributes {stable_mosaic.version = 11 : i64} {
  func.func @kernel(%arg0: i32, %arg1: memref<2xf32, #tpu.memory_space<smem>>, %arg2: memref<16x128xf32, #tpu.memory_space<vmem>>, %arg3: memref<1x128xf32, #tpu.memory_space<vmem>>) attributes {dimension_semantics = [#tpu.dimension_semantics<arbitrary>], iteration_bounds = array<i64: 1>, scalar_prefetch = 0 : i64, scratch_operands = 0 : i64, tpu.core_type = #tpu.core_type<tc>, window_params = [{transform_indices = @transform_0, window_bounds = array<i64: 2>}, {transform_indices = @transform_1, window_bounds = array<i64: 16, 128>}, {pipeline_mode = #tpu.pipeline_mode<synchronous>, transform_indices = @transform_2, window_bounds = array<i64: 1, 128>}]} {
    %c0 = arith.constant 0 : index
    %0 = memref.load %arg1[%c0] : memref<2xf32, #tpu.memory_space<smem>>
    %c1 = arith.constant 1 : index
    %1 = memref.load %arg1[%c1] : memref<2xf32, #tpu.memory_space<smem>>
    %cst = arith.constant 2.000000e+00 : f32
    %2 = arith.mulf %cst, %0 : f32
    %3 = arith.addf %2, %1 : f32
    %cst_0 = arith.constant 5.000000e-01 : f32
    %4 = arith.mulf %3, %cst_0 : f32
    %c0_1 = arith.constant 0 : index
    %c0_2 = arith.constant 0 : index
    %5 = vector.load %arg2[%c0_1, %c0_2] : memref<16x128xf32, #tpu.memory_space<vmem>>, vector<16x128xf32>
    %cst_3 = arith.constant -5.000000e-01 : f32
    %6 = vector.broadcast %cst_3 : f32 to vector<16x128xf32>
    %7 = arith.mulf %6, %5 : vector<16x128xf32>
    %8 = vector.broadcast %4 : f32 to vector<16x128xf32>
    %9 = arith.addf %7, %8 : vector<16x128xf32>
    %10 = arith.mulf %5, %9 : vector<16x128xf32>
    %cst_4 = arith.constant dense<0.000000e+00> : vector<128xf32>
    %11 = vector.multi_reduction <add>, %10, %cst_4 [0] : vector<16x128xf32> to vector<128xf32>
    %12 = vector.shape_cast %11 : vector<128xf32> to vector<1x128xf32>
    %c0_5 = arith.constant 0 : index
    %c0_6 = arith.constant 0 : index
    %13 = vector.load %arg3[%c0_5, %c0_6] : memref<1x128xf32, #tpu.memory_space<vmem>>, vector<1x128xf32>
    tpu.vector_store %arg3[%c0_5, %c0_6], %12 {strides = array<i32>} : memref<1x128xf32, #tpu.memory_space<vmem>>, vector<1x128xf32>,
    return
  }
  func.func @transform_0(%arg0: i32) -> i32 {
    %c0_i32 = arith.constant 0 : i32
    %c0_i32_0 = arith.constant 0 : i32
    return %c0_i32 : i32
  }
  func.func @transform_1(%arg0: i32) -> (i32, i32) {
    %c0_i32 = arith.constant 0 : i32
    %c0_i32_0 = arith.constant 0 : i32
    return %arg0, %c0_i32 : i32, i32
  }
  func.func @transform_2(%arg0: i32) -> (i32, i32) {
    %c0_i32 = arith.constant 0 : i32
    %c0_i32_0 = arith.constant 0 : i32
    %c0_i32_1 = arith.constant 0 : i32
    return %c0_i32, %c0_i32_0 : i32, i32
  }
}

</mosaic_0001>

<llo_original>
// kernel: tpu_custom_call.1
$region0: #{tpu_custom_call.1}
  #allocation0 [shape = 'u32[]', space=smem, size = 0x4, offset = 0x4, fixed_abs, tag = 'smem constant byte address 0x4 - core index']
  #allocation1 [shape = 'u32[72,128]{1,0:T(1,128)}', space=vmem, size = 0x9000, scoped, tag = 'internal scratch']
  %s0 = inlined_call_operand.hbm [shape: f32[2], index: 0, kind: input, shape index: {}]
  %s1 = inlined_call_operand.hbm [shape: f32[16,128], index: 1, kind: input, shape index: {}]
  %s2 = inlined_call_operand.hbm [shape: f32[1,128], index: 2, kind: output, shape index: {}]
  %s3 = sld [smem:[#allocation0]]
  $region26: #{tpu_custom_call.1} parent=0
    _
  %s5 = ssub.s32 1, %s3
  %s6 = scalar_select 0, %s5, %s3
  $region1: #{tpu_custom_call.1} parent=0
    #allocation2 [shape = 'u8[512]{0}', space=smem, size = 0x200, scoped, tag = 'input window, operand 0, single buffered']
    #allocation3 [shape = 's32[1]{0}', space=sflag, size = 0x4, scoped, tag = 'scoped memory for tpu_custom_call.1']
    #allocation4 [shape = 's32[1]{0}', space=sflag, size = 0x4, scoped, tag = 'scoped memory for tpu_custom_call.1']
    #allocation5 [shape = 's32[1]{0}', space=sflag, size = 0x4, scoped, tag = 'scoped memory for tpu_custom_call.1']
    #allocation6 [shape = 'u8[8192]{0}', space=vmem, size = 0x2000, scoped, tag = 'input window, operand 1, single buffered']
    #allocation7 [shape = 'u8[512]{0}', space=vmem, size = 0x400, scoped, tag = 'output window, operand 0, single buffered']
    %7 = vsyncpa [#allocation5], 0
    %8 = vsyncpa [#allocation3], 0
    %9 = vsyncpa [#allocation4], 0
    // Predicated region
    $region2: #{tpu_custom_call.1} parent=1 // pred_check
      _
    $region3: #{tpu_custom_call.1} parent=1 // pred_check_branch
      %11 = sbr.rel (0) target = $region5
    $region4: #{tpu_custom_call.1} parent=1 // pred_region
      %13 = vsyncadd [#allocation5], 0
      %s15 = sshll.u32 %s0, 4
      %s16 = int_to_ptr.hbm [resolvable:$true] %s15
      %18 = dma.hbm_to_smem %s16, 16, [#allocation2], [#allocation5]
    $region5: #{tpu_custom_call.1} parent=1 // pred_fallthru
      _
    // Predicated region
    $region6: #{tpu_custom_call.1} parent=1 // pred_check
      _
    $region7: #{tpu_custom_call.1} parent=1 // pred_check_branch
      %20 = sbr.rel (0) target = $region9
    $region8: #{tpu_custom_call.1} parent=1 // pred_region
      %22 = vsyncadd [#allocation3], 0
      %s23 = sshll.u32 %s1, 4
      %s24 = int_to_ptr.hbm [resolvable:$true] %s23
      %s25 = sshll.u32 [#allocation6], 4
      %s26 = int_to_ptr.vmem [resolvable:$true] %s25
      %31 = dma.hbm_to_vmem [thread:$0]  %s24, 256, %s26, [#allocation3], 128, 128, 8
    $region9: #{tpu_custom_call.1} parent=1 // pred_fallthru
      _
    // Predicated region
    $region10: #{tpu_custom_call.1} parent=1 // pred_check
      _
    $region11: #{tpu_custom_call.1} parent=1 // pred_check_branch
      %33 = sbr.rel (0) target = $region13
    $region12: #{tpu_custom_call.1} parent=1 // pred_region
      %35 = dma.done [#allocation5], 16
    $region13: #{tpu_custom_call.1} parent=1 // pred_fallthru
      _
    // Predicated region
    $region14: #{tpu_custom_call.1} parent=1 // pred_check
      _
    $region15: #{tpu_custom_call.1} parent=1 // pred_check_branch
      %37 = sbr.rel (0) target = $region17
    $region16: #{tpu_custom_call.1} parent=1 // pred_region
      %39 = dma.done [#allocation3], 256
    $region17: #{tpu_custom_call.1} parent=1 // pred_fallthru
      _
    %40 = sfence
    %s41 = sld [smem:[#allocation2]]
    %s42 = sld [smem:[#allocation2 + $0x1]]
    %s43 = smul.f32 %s41, 2.0
    %s44 = sadd.f32 %s43, %s42
    %s45 = smul.f32 %s44, 0.5
    %v46 = vld [vmem:[#allocation6] sm:$0xff]
    %v47 = vld [vmem:[#allocation6 + $0x8] sm:$0xff]
    %v48 = vmul.f32 %v46, -0.5
    %v49 = vmul.f32 %v47, -0.5
    %v50 = vstv %s45
    %v51 = vadd.f32 %v48, %v50
    %v52 = vadd.f32 %v49, %v50
    %v53 = vmul.f32 %v46, %v51
    %v54 = vmul.f32 %v47, %v52
    %v55 = vadd.f32 %v53, %v54
    %v56 = vrot.slane %v55, 4
    %v57 = vadd.f32 %v55, %v56
    %v58 = vrot.slane %v57, 2
    %v59 = vadd.f32 %v57, %v58
    %v60 = vrot.slane %v59, 1
    %v61 = vadd.f32 %v59, %v60
    %62 = vst [vmem:[#allocation7] sm:$0x1] %v61
    // Predicated region
    $region18: #{tpu_custom_call.1} parent=1 // pred_check
      _
    $region19: #{tpu_custom_call.1} parent=1 // pred_check_branch
      %64 = sbr.rel (0) target = $region21
    $region20: #{tpu_custom_call.1} parent=1 // pred_region
      %66 = vsyncadd [#allocation4], 0
      %s68 = sshll.u32 [#allocation7], 4
      %s69 = int_to_ptr.vmem [resolvable:$true] %s68
      %s70 = sshll.u32 %s2, 4
      %s71 = int_to_ptr.hbm [resolvable:$true] %s70
      %73 = dma.vmem_to_hbm [thread:$0]  %s69, 16, %s71, [#allocation4]
    $region21: #{tpu_custom_call.1} parent=1 // pred_fallthru
      _
    // Predicated region
    $region22: #{tpu_custom_call.1} parent=1 // pred_check
      _
    $region23: #{tpu_custom_call.1} parent=1 // pred_check_branch
      %75 = sbr.rel (0) target = $region25
    $region24: #{tpu_custom_call.1} parent=1 // pred_region
      %77 = dma.done [#allocation4], 16
    $region25: #{tpu_custom_call.1} parent=1 // pred_fallthru
      _
    %78 = vsyncpa [#allocation3], 1
    %79 = vsyncpa [#allocation4], 1
    %80 = vsyncpa [#allocation5], 1

</llo_original>
